<compile_context>
chip_gen: v5e
topology: v5e:2x2
jax: 0.10.0
libtpu: 0.0.40
codegen_flags: <defaults>
</compile_context>

<pallas_src>
import functools
import math

import jax
import jax.numpy as jnp
from jax.experimental import pallas as pl
from jax.experimental.pallas import tpu as pltpu

_LANES = 128
_TWO_PI = 2.0 * math.pi

# int32 two's-complement views of the mixing constants.
_M1 = -2048144789       # 0x85EBCA6B
_M2 = -1028477379       # 0xC2B2AE35
_GOLDEN = -1640531527   # 0x9E3779B9
_ROUND2 = 0x27D4EB2F


def _lshr32(v, k):
    """Logical right shift of an int32 array by a static amount k."""
    return jnp.right_shift(v, k) & jnp.int32((1 << (32 - k)) - 1)


def _mix32(v):
    """murmur3 fmix32 finalizer on (wrapping) int32 arrays."""
    v = v ^ _lshr32(v, 16)
    v = v * jnp.int32(_M1)
    v = v ^ _lshr32(v, 13)
    v = v * jnp.int32(_M2)
    v = v ^ _lshr32(v, 16)
    return v


def _gaussian_noise_kernel(seed_ref, x_ref, o_ref, *, noise, block_rows):
    """x block is (block_rows, 128); one hash word feeds TWO output elements."""
    h = block_rows // 2  # static Python int

    # Global word index for this tile (one 32-bit word per pair of outputs).
    base = pl.program_id(0) * (h * _LANES)
    row = jax.lax.broadcasted_iota(jnp.int32, (h, _LANES), 0)
    col = jax.lax.broadcasted_iota(jnp.int32, (h, _LANES), 1)
    idx = base + row * _LANES + col

    # Counter-based PRNG: mix the seed into the counter, two avalanche rounds.
    seed = seed_ref[0]
    v = idx ^ (seed * jnp.int32(_GOLDEN))
    v = _mix32(v)
    v = _mix32(v ^ jnp.int32(_ROUND2))

    # Split each 32-bit word into two 16-bit uniforms.
    hi = jnp.right_shift(v, 16) & jnp.int32(0xFFFF)   # [0, 65535]
    lo = v & jnp.int32(0xFFFF)                        # [0, 65535]
    u1 = (hi.astype(jnp.float32) + 0.5) * (1.0 / 65536.0)   # (0, 1) -> log finite
    u2 = lo.astype(jnp.float32) * (1.0 / 65536.0)           # [0, 1)

    # Box-Muller, keeping BOTH outputs (cos and sin branch).
    r = jnp.sqrt(-2.0 * jnp.log(u1))
    theta = _TWO_PI * u2
    z1 = r * jnp.cos(theta)
    z2 = r * jnp.sin(theta)

    # Add in the output dtype (bf16 stays bf16 on the VPU); static half-splits.
    o_ref[:h, :] = x_ref[:h, :] + (noise * z1).astype(o_ref.dtype)
    o_ref[h:, :] = x_ref[h:, :] + (noise * z2).astype(o_ref.dtype)


def gaussian_noise(x, *, noise, seed, training=True, random_eval=False,
                   block_rows=1024):
    """Pallas implementation of GaussianNoise.forward."""
    if not (training or random_eval):
        return x  # identity path, no kernel needed

    orig_shape = x.shape
    orig_dtype = x.dtype

    n = x.size
    rows = pl.cdiv(n, _LANES)

    # Block rows: multiple of 16 (even for the Box-Muller pairing, and >= the
    # bf16 sublane minimum), capped by the actual row count.
    br = max(16, min(int(block_rows), ((rows + 15) // 16) * 16))
    br = ((br + 15) // 16) * 16

    padded_rows = ((rows + br - 1) // br) * br
    n_pad = padded_rows * _LANES

    flat = x.reshape(-1)
    if n_pad != n:
        flat = jnp.pad(flat, (0, n_pad - n))
    x2d = flat.reshape(padded_rows, _LANES)

    seed_arr = jnp.asarray(seed, dtype=jnp.int32).reshape((1,))

    kernel = functools.partial(_gaussian_noise_kernel,
                               noise=float(noise), block_rows=br)

    out2d = pl.pallas_call(
        kernel,
        out_shape=jax.ShapeDtypeStruct((padded_rows, _LANES), orig_dtype),
        grid_spec=pltpu.PrefetchScalarGridSpec(
            num_scalar_prefetch=1,
            grid=(padded_rows // br,),
            in_specs=[
                pl.BlockSpec((br, _LANES), lambda i, seed: (i, 0)),
            ],
            out_specs=pl.BlockSpec((br, _LANES), lambda i, seed: (i, 0)),
        ),
        compiler_params=pltpu.CompilerParams(
            # Randomness depends only on (seed, global index) -> order-free,
            # safe to shard row blocks across TensorCores (v7x megacore win).
            dimension_semantics=("parallel",),
        ),
    )(seed_arr, x2d)

    if n_pad != n:
        return out2d.reshape(-1)[:n].reshape(orig_shape)
    return out2d.reshape(orig_shape)


if __name__ == "__main__":
    key = jax.random.PRNGKey(0)
    # Small NCHW activation tensor, consistent with typical conv feature maps.
    x = jax.random.normal(key, (2, 4, 16, 16), dtype=jnp.float32)
    noise = 0.1

    # Training path: x + noise * N(0, 1)
    y = gaussian_noise(x, noise=noise, seed=1234, training=True)
    y = jax.block_until_ready(y)
    assert y.shape == x.shape and y.dtype == x.dtype

    # Sanity: perturbation should be ~unit-normal after unscaling.
    delta = (y - x) / noise
    assert abs(float(jnp.mean(delta))) < 0.2
    std = float(jnp.std(delta))
    assert 0.7 < std < 1.3

    # Eval path: identity.
    y_eval = gaussian_noise(x, noise=noise, seed=1234, training=False)
    y_eval = jax.block_until_ready(y_eval)
    assert bool(jnp.array_equal(y_eval, x))

    print("KERNEL_OK")
</pallas_src>

<mosaic_0001>
module attributes {stable_mosaic.version = 11 : i64} {
  func.func @_gaussian_noise_kernel(%arg0: i32, %arg1: memref<1xi32, #tpu.memory_space<smem>>, %arg2: memref<16x128xf32, #tpu.memory_space<vmem>>, %arg3: memref<16x128xf32, #tpu.memory_space<vmem>>) attributes {dimension_semantics = [#tpu.dimension_semantics<parallel>], iteration_bounds = array<i64: 1>, scalar_prefetch = 1 : i64, scratch_operands = 0 : i64, tpu.core_type = #tpu.core_type<tc>, window_params = [{transform_indices = @transform_0, window_bounds = array<i64: 16, 128>}, {transform_indices = @transform_1, window_bounds = array<i64: 16, 128>}]} {
    %c1024_i32 = arith.constant 1024 : i32
    %0 = arith.muli %arg0, %c1024_i32 : i32
    %1 = tpu.iota {dimensions = array<i32: 0>} : vector<8x128xi32>
    %2 = tpu.iota {dimensions = array<i32: 1>} : vector<8x128xi32>
    %c128_i32 = arith.constant 128 : i32
    %3 = vector.broadcast %c128_i32 : i32 to vector<8x128xi32>
    %4 = arith.muli %1, %3 : vector<8x128xi32>
    %5 = vector.broadcast %0 : i32 to vector<8x128xi32>
    %6 = arith.addi %5, %4 : vector<8x128xi32>
    %7 = arith.addi %6, %2 : vector<8x128xi32>
    %c0 = arith.constant 0 : index
    %8 = memref.load %arg1[%c0] : memref<1xi32, #tpu.memory_space<smem>>
    %c-1640531527_i32 = arith.constant -1640531527 : i32
    %9 = arith.muli %8, %c-1640531527_i32 : i32
    %10 = vector.broadcast %9 : i32 to vector<8x128xi32>
    %11 = arith.xori %7, %10 : vector<8x128xi32>
    %c16_i32 = arith.constant 16 : i32
    %12 = vector.broadcast %c16_i32 : i32 to vector<8x128xi32>
    %13 = arith.shrsi %11, %12 : vector<8x128xi32>
    %c65535_i32 = arith.constant 65535 : i32
    %14 = vector.broadcast %c65535_i32 : i32 to vector<8x128xi32>
    %15 = arith.andi %13, %14 : vector<8x128xi32>
    %16 = arith.xori %11, %15 : vector<8x128xi32>
    %c-2048144789_i32 = arith.constant -2048144789 : i32
    %17 = vector.broadcast %c-2048144789_i32 : i32 to vector<8x128xi32>
    %18 = arith.muli %16, %17 : vector<8x128xi32>
    %c13_i32 = arith.constant 13 : i32
    %19 = vector.broadcast %c13_i32 : i32 to vector<8x128xi32>
    %20 = arith.shrsi %18, %19 : vector<8x128xi32>
    %c524287_i32 = arith.constant 524287 : i32
    %21 = vector.broadcast %c524287_i32 : i32 to vector<8x128xi32>
    %22 = arith.andi %20, %21 : vector<8x128xi32>
    %23 = arith.xori %18, %22 : vector<8x128xi32>
    %c-1028477379_i32 = arith.constant -1028477379 : i32
    %24 = vector.broadcast %c-1028477379_i32 : i32 to vector<8x128xi32>
    %25 = arith.muli %23, %24 : vector<8x128xi32>
    %c16_i32_0 = arith.constant 16 : i32
    %26 = vector.broadcast %c16_i32_0 : i32 to vector<8x128xi32>
    %27 = arith.shrsi %25, %26 : vector<8x128xi32>
    %c65535_i32_1 = arith.constant 65535 : i32
    %28 = vector.broadcast %c65535_i32_1 : i32 to vector<8x128xi32>
    %29 = arith.andi %27, %28 : vector<8x128xi32>
    %30 = arith.xori %25, %29 : vector<8x128xi32>
    %c668265263_i32 = arith.constant 668265263 : i32
    %31 = vector.broadcast %c668265263_i32 : i32 to vector<8x128xi32>
    %32 = arith.xori %30, %31 : vector<8x128xi32>
    %c16_i32_2 = arith.constant 16 : i32
    %33 = vector.broadcast %c16_i32_2 : i32 to vector<8x128xi32>
    %34 = arith.shrsi %32, %33 : vector<8x128xi32>
    %c65535_i32_3 = arith.constant 65535 : i32
    %35 = vector.broadcast %c65535_i32_3 : i32 to vector<8x128xi32>
    %36 = arith.andi %34, %35 : vector<8x128xi32>
    %37 = arith.xori %32, %36 : vector<8x128xi32>
    %c-2048144789_i32_4 = arith.constant -2048144789 : i32
    %38 = vector.broadcast %c-2048144789_i32_4 : i32 to vector<8x128xi32>
    %39 = arith.muli %37, %38 : vector<8x128xi32>
    %c13_i32_5 = arith.constant 13 : i32
    %40 = vector.broadcast %c13_i32_5 : i32 to vector<8x128xi32>
    %41 = arith.shrsi %39, %40 : vector<8x128xi32>
    %c524287_i32_6 = arith.constant 524287 : i32
    %42 = vector.broadcast %c524287_i32_6 : i32 to vector<8x128xi32>
    %43 = arith.andi %41, %42 : vector<8x128xi32>
    %44 = arith.xori %39, %43 : vector<8x128xi32>
    %c-1028477379_i32_7 = arith.constant -1028477379 : i32
    %45 = vector.broadcast %c-1028477379_i32_7 : i32 to vector<8x128xi32>
    %46 = arith.muli %44, %45 : vector<8x128xi32>
    %c16_i32_8 = arith.constant 16 : i32
    %47 = vector.broadcast %c16_i32_8 : i32 to vector<8x128xi32>
    %48 = arith.shrsi %46, %47 : vector<8x128xi32>
    %c65535_i32_9 = arith.constant 65535 : i32
    %49 = vector.broadcast %c65535_i32_9 : i32 to vector<8x128xi32>
    %50 = arith.andi %48, %49 : vector<8x128xi32>
    %51 = arith.xori %46, %50 : vector<8x128xi32>
    %c16_i32_10 = arith.constant 16 : i32
    %52 = vector.broadcast %c16_i32_10 : i32 to vector<8x128xi32>
    %53 = arith.shrsi %51, %52 : vector<8x128xi32>
    %c65535_i32_11 = arith.constant 65535 : i32
    %54 = vector.broadcast %c65535_i32_11 : i32 to vector<8x128xi32>
    %55 = arith.andi %53, %54 : vector<8x128xi32>
    %c65535_i32_12 = arith.constant 65535 : i32
    %56 = vector.broadcast %c65535_i32_12 : i32 to vector<8x128xi32>
    %57 = arith.andi %51, %56 : vector<8x128xi32>
    %58 = arith.sitofp %55 : vector<8x128xi32> to vector<8x128xf32>
    %cst = arith.constant 5.000000e-01 : f32
    %59 = vector.broadcast %cst : f32 to vector<8x128xf32>
    %60 = arith.addf %58, %59 : vector<8x128xf32>
    %cst_13 = arith.constant 1.52587891E-5 : f32
    %61 = vector.broadcast %cst_13 : f32 to vector<8x128xf32>
    %62 = arith.mulf %60, %61 : vector<8x128xf32>
    %63 = arith.sitofp %57 : vector<8x128xi32> to vector<8x128xf32>
    %cst_14 = arith.constant 1.52587891E-5 : f32
    %64 = vector.broadcast %cst_14 : f32 to vector<8x128xf32>
    %65 = arith.mulf %63, %64 : vector<8x128xf32>
    %66 = math.log %62 : vector<8x128xf32>
    %cst_15 = arith.constant -2.000000e+00 : f32
    %67 = vector.broadcast %cst_15 : f32 to vector<8x128xf32>
    %68 = arith.mulf %67, %66 : vector<8x128xf32>
    %69 = math.sqrt %68 : vector<8x128xf32>
    %cst_16 = arith.constant 6.28318548 : f32
    %70 = vector.broadcast %cst_16 : f32 to vector<8x128xf32>
    %71 = arith.mulf %70, %65 : vector<8x128xf32>
    %72 = math.cos %71 : vector<8x128xf32>
    %73 = arith.mulf %69, %72 : vector<8x128xf32>
    %74 = math.sin %71 : vector<8x128xf32>
    %75 = arith.mulf %69, %74 : vector<8x128xf32>
    %c0_17 = arith.constant 0 : index
    %c0_18 = arith.constant 0 : index
    %76 = vector.load %arg2[%c0_17, %c0_18] : memref<16x128xf32, #tpu.memory_space<vmem>>, vector<8x128xf32>
    %cst_19 = arith.constant 1.000000e-01 : f32
    %77 = vector.broadcast %cst_19 : f32 to vector<8x128xf32>
    %78 = arith.mulf %77, %73 : vector<8x128xf32>
    %79 = arith.addf %76, %78 : vector<8x128xf32>
    %c0_20 = arith.constant 0 : index
    %c0_21 = arith.constant 0 : index
    %80 = vector.load %arg3[%c0_20, %c0_21] : memref<16x128xf32, #tpu.memory_space<vmem>>, vector<8x128xf32>
    tpu.vector_store %arg3[%c0_20, %c0_21], %79 {strides = array<i32>} : memref<16x128xf32, #tpu.memory_space<vmem>>, vector<8x128xf32>,
    %c8 = arith.constant 8 : index
    %c0_22 = arith.constant 0 : index
    %81 = vector.load %arg2[%c8, %c0_22] : memref<16x128xf32, #tpu.memory_space<vmem>>, vector<8x128xf32>
    %cst_23 = arith.constant 1.000000e-01 : f32
    %82 = vector.broadcast %cst_23 : f32 to vector<8x128xf32>
    %83 = arith.mulf %82, %75 : vector<8x128xf32>
    %84 = arith.addf %81, %83 : vector<8x128xf32>
    %c8_24 = arith.constant 8 : index
    %c0_25 = arith.constant 0 : index
    %85 = vector.load %arg3[%c8_24, %c0_25] : memref<16x128xf32, #tpu.memory_space<vmem>>, vector<8x128xf32>
    tpu.vector_store %arg3[%c8_24, %c0_25], %84 {strides = array<i32>} : memref<16x128xf32, #tpu.memory_space<vmem>>, vector<8x128xf32>,
    return
  }
  func.func @transform_0(%arg0: i32, %arg1: memref<1xi32, #tpu.memory_space<smem>>) -> (i32, i32) {
    %c0_i32 = arith.constant 0 : i32
    %c0_i32_0 = arith.constant 0 : i32
    return %arg0, %c0_i32 : i32, i32
  }
  func.func @transform_1(%arg0: i32, %arg1: memref<1xi32, #tpu.memory_space<smem>>) -> (i32, i32) {
    %c0_i32 = arith.constant 0 : i32
    %c0_i32_0 = arith.constant 0 : i32
    return %arg0, %c0_i32 : i32, i32
  }
}

</mosaic_0001>

<llo_original>
// kernel: tpu_custom_call.1
$region0: #{tpu_custom_call.1}
  #allocation0 [shape = 'u32[]', space=smem, size = 0x4, offset = 0x4, fixed_abs, tag = 'smem constant byte address 0x4 - core index']
  #allocation1 [shape = 'u32[72,128]{1,0:T(1,128)}', space=vmem, size = 0x9000, scoped, tag = 'internal scratch']
  #allocation2 [shape = 's32[1]{0}', space=sflag, size = 0x4, scoped, tag = 'scoped memory for tpu_custom_call.1']
  #allocation3 [shape = 's32[1]{0:T(128)S(6)}', space=smem, size = 0x200, scoped, tag = 'prefetched SMEM operand 0']
  %s0 = inlined_call_operand.<no memory space> [shape: s32[1], index: 0, kind: input, shape index: {}]
  %s1 = inlined_call_operand.hbm [shape: f32[16,128], index: 1, kind: input, shape index: {}]
  %s2 = inlined_call_operand.hbm [shape: f32[16,128], index: 2, kind: output, shape index: {}]
  %s3 = sld [smem:[#allocation0]]
  $region18: #{tpu_custom_call.1} parent=0
    _
  %s5 = ssub.s32 1, %s3
  %s6 = scalar_select 0, %s5, %s3
  %7 = sst [smem:[#allocation3]] %s0
  $region1: #{tpu_custom_call.1} parent=0
    #allocation4 [shape = 'u8[8192]{0}', space=vmem, size = 0x2000, scoped, tag = 'input window, operand 1, single buffered']
    #allocation5 [shape = 's32[1]{0}', space=sflag, size = 0x4, scoped, tag = 'scoped memory for tpu_custom_call.1']
    #allocation6 [shape = 's32[1]{0}', space=sflag, size = 0x4, scoped, tag = 'scoped memory for tpu_custom_call.1']
    #allocation7 [shape = 'u8[8192]{0}', space=vmem, size = 0x2000, scoped, tag = 'output window, operand 0, single buffered']
    %8 = vsyncpa [#allocation5], 0
    %9 = vsyncpa [#allocation6], 0
    // Predicated region
    $region2: #{tpu_custom_call.1} parent=1 // pred_check
      _
    $region3: #{tpu_custom_call.1} parent=1 // pred_check_branch
      %11 = sbr.rel (0) target = $region5
    $region4: #{tpu_custom_call.1} parent=1 // pred_region
      %13 = vsyncadd [#allocation5], 0
      %s14 = sshll.u32 %s1, 4
      %s15 = int_to_ptr.hbm [resolvable:$true] %s14
      %s16 = sshll.u32 [#allocation4], 4
      %s17 = int_to_ptr.vmem [resolvable:$true] %s16
      %22 = dma.hbm_to_vmem [thread:$0]  %s15, 256, %s17, [#allocation5], 128, 128, 8
    $region5: #{tpu_custom_call.1} parent=1 // pred_fallthru
      _
    // Predicated region
    $region6: #{tpu_custom_call.1} parent=1 // pred_check
      _
    $region7: #{tpu_custom_call.1} parent=1 // pred_check_branch
      %24 = sbr.rel (0) target = $region9
    $region8: #{tpu_custom_call.1} parent=1 // pred_region
      %26 = dma.done [#allocation5], 256
    $region9: #{tpu_custom_call.1} parent=1 // pred_fallthru
      _
    %s27 = smul.u32 0, 1024
    %v28 = vlaneseq
    %v29 = vshrl.u32 %v28, 7
    %v30 = vlaneseq
    %v31 = vand.u32 %v30, 127
    %v32 = vmul.u32 %v29, 128
    %v33 = vstv %s27
    %v34 = vadd.s32 %v33, %v32
    %v35 = vadd.s32 %v34, %v31
    %s36 = sld [smem:[#allocation3]]
    %s37 = smul.u32 %s36, 2654435769
    %v38 = vstv %s37
    %v39 = vxor.u32 %v35, %v38
    %v40 = vshra.s32 %v39, 16
    %v41 = vand.u32 %v40, 65535
    %v42 = vxor.u32 %v39, %v41
    %v43 = vmul.u32 %v42, 2246822507
    %v44 = vshra.s32 %v43, 13
    %v45 = vand.u32 %v44, 524287
    %v46 = vxor.u32 %v43, %v45
    %v47 = vmul.u32 %v46, 3266489917
    %v48 = vshra.s32 %v47, 16
    %v49 = vand.u32 %v48, 65535
    %v50 = vxor.u32 %v47, %v49
    %v51 = vxor.u32 %v50, 668265263
    %v52 = vshra.s32 %v51, 16
    %v53 = vand.u32 %v52, 65535
    %v54 = vxor.u32 %v51, %v53
    %v55 = vmul.u32 %v54, 2246822507
    %v56 = vshra.s32 %v55, 13
    %v57 = vand.u32 %v56, 524287
    %v58 = vxor.u32 %v55, %v57
    %v59 = vmul.u32 %v58, 3266489917
    %v60 = vshra.s32 %v59, 16
    %v61 = vand.u32 %v60, 65535
    %v62 = vxor.u32 %v59, %v61
    %v63 = vshra.s32 %v62, 16
    %v64 = vand.u32 %v63, 65535
    %v65 = vand.u32 %v62, 65535
    %v66 = vcvt.s32.f32 %v64
    %v67 = vadd.f32 %v66, 0.5
    %v68 = vmul.f32 %v67, 1.5258789e-05
    %v69 = vcvt.s32.f32 %v65
    %v70 = vmul.f32 %v69, 1.5258789e-05
    %v71 = vlog2.pop %v68
    %v72 = vmul.f32 %v71, 0.6931472
    %v73 = vmul.f32 %v72, -2.0
    %v74 = vrsqrt.pop %v73
    %v75 = vmul.f32 %v74, %v73
    %v76 = vmul.f32 %v75, %v74
    %v77 = vmul.f32 0.5, %v76
    %v78 = vsub.f32 1.5, %v77
    %v79 = vmul.f32 %v74, %v78
    %v80 = vmul.f32 %v73, %v79
    %vm81 = vcmp.eq.f32.partialorder %v73, inf
    %v82 = vsel %vm81, %v73, %v80
    %vm83 = vcmp.eq.f32.partialorder %v73, 0.0
    %v84 = vand.u32 %v73, 2147483648
    %v85 = vsel %vm83, %v84, %v82
    %v86 = vmul.f32 %v70, 6.2831855
    %v87 = vand.u32 2147483647, %v86
    %vm88 = vcmp.le.f32.partialorder %v87, 0.7853982
    %vm89 = vcmp.lt.s32.totalorder %v86, 0
    %v90 = vand.u32 %v86, 2139095040
    %v91 = vshrl.u32 %v90, 23
    %v92 = vsub.s32 %v91, 127
    %v93 = vand.u32 2147483647, %v86
    %v94 = vand.u32 %v93, 8388607
    %v95 = vor.u32 %v94, 8388608
    %v96 = vsub.s32 0, %v95
    %v97 = vadd.s32 %v92, 1
    %vm98 = vcmp.gt.s32.totalorder %v97, 0
    %v99 = vsel %vm98, %v97, 0
    %v100 = vshrl.u32 %v99, 5
    %v101 = vand.u32 %v99, 31
    %v102 = vsub.s32 32, %v101
    %v103 = vshrl.u32 683565275, %v102
    %v104 = vshll.u32 683565275, %v101
    %v105 = vshrl.u32 2475754826, %v102
    %v106 = vor.u32 %v104, %v105
    %v107 = vshll.u32 2475754826, %v101
    %v108 = vshrl.u32 2131351028, %v102
    %v109 = vor.u32 %v107, %v108
    %v110 = vshll.u32 2131351028, %v101
    %v111 = vshrl.u32 2102212464, %v102
    %v112 = vor.u32 %v110, %v111
    %v113 = vshll.u32 2102212464, %v101
    %v114 = vshrl.u32 920167782, %v102
    %v115 = vor.u32 %v113, %v114
    %v116 = vshll.u32 920167782, %v101
    %v117 = vshrl.u32 1326507024, %v102
    %v118 = vor.u32 %v116, %v117
    %vm119 = vcmp.lt.s32.totalorder %v100, 1
    %vm120 = vcmp.lt.s32.totalorder %v100, 2
    %vm121 = vcmp.lt.s32.totalorder %v100, 3
    %vm122 = vcmp.lt.s32.totalorder %v100, 4
    %v123 = vsel %vm119, %v103, %v106
    %v124 = vsel %vm122, %v112, 2102212464
    %v125 = vsel %vm121, %v109, %v124
    %v126 = vsel %vm120, %v123, %v125
    %v127 = vsel %vm119, %v106, %v109
    %v128 = vsel %vm122, %v115, 920167782
    %v129 = vsel %vm121, %v112, %v128
    %v130 = vsel %vm120, %v127, %v129
    %v131 = vsel %vm119, %v109, %v112
    %v132 = vsel %vm122, %v118, 1326507024
    %v133 = vsel %vm121, %v115, %v132
    %v134 = vsel %vm120, %v131, %v133
    %v135 = vshll.u32 %v95, 8
    %v136 = vand.u32 %v135, 65535
    %v137 = vshrl.u32 %v135, 16
    %v138 = vand.u32 %v134, 65535
    %v139 = vshrl.u32 %v134, 16
    %v140 = vmul.u32 %v136, %v138
    %v141 = vmul.u32 %v136, %v139
    %v142 = vmul.u32 %v137, %v138
    %v143 = vmul.u32 %v137, %v139
    %v144 = vshll.u32 %v141, 16
    %v145 = vshrl.u32 %v141, 16
    %v146 = vshll.u32 %v142, 16
    %v147 = vshrl.u32 %v142, 16
    %vm148 = vc.u32 %v140, %v144
    %v149 = vsel %vm148, 1, 0
    %v150 = vadd.s32 %v140, %v144
    %v151 = vadd.s32 %v143, %v149
    %vm152 = vc.u32 %v150, %v146
    %v153 = vsel %vm152, 1, 0
    %v154 = vadd.s32 %v150, %v146
    %v155 = vadd.s32 %v151, %v153
    %v156 = vadd.s32 %v155, %v145
    %v157 = vadd.s32 %v156, %v147
    %v158 = vand.u32 %v135, 65535
    %v159 = vshrl.u32 %v135, 16
    %v160 = vand.u32 %v130, 65535
    %v161 = vshrl.u32 %v130, 16
    %v162 = vmul.u32 %v158, %v160
    %v163 = vmul.u32 %v158, %v161
    %v164 = vmul.u32 %v159, %v160
    %v165 = vmul.u32 %v159, %v161
    %v166 = vshll.u32 %v163, 16
    %v167 = vshrl.u32 %v163, 16
    %v168 = vshll.u32 %v164, 16
    %v169 = vshrl.u32 %v164, 16
    %vm170 = vc.u32 %v162, %v166
    %v171 = vsel %vm170, 1, 0
    %v172 = vadd.s32 %v162, %v166
    %v173 = vadd.s32 %v165, %v171
    %vm174 = vc.u32 %v172, %v168
    %v175 = vsel %vm174, 1, 0
    %v176 = vadd.s32 %v172, %v168
    %v177 = vadd.s32 %v173, %v175
    %v178 = vadd.s32 %v177, %v167
    %v179 = vadd.s32 %v178, %v169
    %v180 = vmul.u32 %v135, %v126
    %v181 = vadd.s32 %v157, %v176
    %vm182 = vc.u32 %v157, %v176
    %v183 = vadd.s32 %v179, 1
    %v184 = vsel %vm182, %v183, %v179
    %v185 = vadd.s32 %v180, %v184
    %v186 = vadd.s32 %v185, 536870912
    %v187 = vshrl.u32 %v186, 30
    %v188 = vshll.u32 %v187, 30
    %v189 = vsub.s32 %v185, %v188
    %vm190 = vcmp.lt.s32.totalorder %v189, 0
    %v191 = vsub.s32 0, %v189
    %v192 = vsel %vm190, %v191, %v189
    %v193 = vclz %v192
    %v194 = vsub.s32 %v193, 2
    %vm195 = vcmp.gt.s32.totalorder 0, %v194
    %v196 = vsel %vm195, 0, %v194
    %v197 = vsub.s32 32, %v196
    %v198 = vshll.u32 %v189, %v196
    %v199 = vshrl.u32 %v181, %v197
    %v200 = vor.u32 %v198, %v199
    %v201 = vsub.s32 4294967266, %v196
    %v202 = vadd.s32 %v201, 127
    %v203 = vshll.u32 %v202, 23
    %v204 = vor.u32 4788187, %v203
    %v205 = vand.u32 2147483647, %v204
    %v207 = vcvt.s32.f32 %v200
    %v208 = vmul.f32 %v207, %v205
    %v209 = vxor.u32 %v208, 2147483648
    %v210 = vsel %vm89, %v209, %v208
    %v211 = vsub.s32 4, %v187
    %v212 = vsel %vm89, %v211, %v187
    %v213 = vsel %vm88, %v86, %v210
    %v214 = vsel %vm88, 0, %v212
    %v215 = vmul.f32 %v213, %v213
    %v216 = vmul.f32 %v215, -0.001358992
    %v217 = vadd.f32 %v216, 0.041655596
    %v218 = vmul.f32 %v215, %v217
    %v219 = vadd.f32 %v218, -0.4999988
    %v220 = vmul.f32 %v215, %v219
    %v221 = vadd.f32 1.0, %v220
    %v222 = vmul.f32 %v213, %v213
    %v223 = vmul.f32 %v222, -0.00019511016
    %v224 = vadd.f32 %v223, 0.008332121
    %v225 = vmul.f32 %v222, %v224
    %v226 = vadd.f32 %v225, -0.16666654
    %v227 = vmul.f32 %v222, %v226
    %v228 = vadd.f32 %v227, 1.0
    %v229 = vmul.f32 %v228, %v213
    %vm230 = vweird.f32 %v86
    %v231 = vand.u32 %v214, 3
    %vm232 = vcmp.lt.s32.totalorder %v231, 2
    %vm233 = vcmp.eq.s32.totalorder %v231, 0
    %v234 = vxor.u32 %v229, 2147483648
    %v235 = vsel %vm233, %v221, %v234
    %vm236 = vcmp.eq.s32.totalorder %v231, 2
    %v237 = vxor.u32 %v221, 2147483648
    %v238 = vsel %vm236, %v237, %v229
    %v239 = vsel %vm232, %v235, %v238
    %v240 = vsel %vm230, nan, %v239
    %v241 = vmul.f32 %v85, %v240
    %v242 = vand.u32 2147483647, %v86
    %vm243 = vcmp.le.f32.partialorder %v242, 0.7853982
    %vm244 = vcmp.lt.s32.totalorder %v86, 0
    %v245 = vand.u32 %v86, 2139095040
    %v246 = vshrl.u32 %v245, 23
    %v247 = vsub.s32 %v246, 127
    %v248 = vand.u32 2147483647, %v86
    %v249 = vand.u32 %v248, 8388607
    %v250 = vor.u32 %v249, 8388608
    %v251 = vsub.s32 0, %v250
    %v252 = vadd.s32 %v247, 1
    %vm253 = vcmp.gt.s32.totalorder %v252, 0
    %v254 = vsel %vm253, %v252, 0
    %v255 = vshrl.u32 %v254, 5
    %v256 = vand.u32 %v254, 31
    %v257 = vsub.s32 32, %v256
    %v258 = vshrl.u32 683565275, %v257
    %v259 = vshll.u32 683565275, %v256
    %v260 = vshrl.u32 2475754826, %v257
    %v261 = vor.u32 %v259, %v260
    %v262 = vshll.u32 2475754826, %v256
    %v263 = vshrl.u32 2131351028, %v257
    %v264 = vor.u32 %v262, %v263
    %v265 = vshll.u32 2131351028, %v256
    %v266 = vshrl.u32 2102212464, %v257
    %v267 = vor.u32 %v265, %v266
    %v268 = vshll.u32 2102212464, %v256
    %v269 = vshrl.u32 920167782, %v257
    %v270 = vor.u32 %v268, %v269
    %v271 = vshll.u32 920167782, %v256
    %v272 = vshrl.u32 1326507024, %v257
    %v273 = vor.u32 %v271, %v272
    %vm274 = vcmp.lt.s32.totalorder %v255, 1
    %vm275 = vcmp.lt.s32.totalorder %v255, 2
    %vm276 = vcmp.lt.s32.totalorder %v255, 3
    %vm277 = vcmp.lt.s32.totalorder %v255, 4
    %v278 = vsel %vm274, %v258, %v261
    %v279 = vsel %vm277, %v267, 2102212464
    %v280 = vsel %vm276, %v264, %v279
    %v281 = vsel %vm275, %v278, %v280
    %v282 = vsel %vm274, %v261, %v264
    %v283 = vsel %vm277, %v270, 920167782
    %v284 = vsel %vm276, %v267, %v283
    %v285 = vsel %vm275, %v282, %v284
    %v286 = vsel %vm274, %v264, %v267
    %v287 = vsel %vm277, %v273, 1326507024
    %v288 = vsel %vm276, %v270, %v287
    %v289 = vsel %vm275, %v286, %v288
    %v290 = vshll.u32 %v250, 8
    %v291 = vand.u32 %v290, 65535
    %v292 = vshrl.u32 %v290, 16
    %v293 = vand.u32 %v289, 65535
    %v294 = vshrl.u32 %v289, 16
    %v295 = vmul.u32 %v291, %v293
    %v296 = vmul.u32 %v291, %v294
    %v297 = vmul.u32 %v292, %v293
    %v298 = vmul.u32 %v292, %v294
    %v299 = vshll.u32 %v296, 16
    %v300 = vshrl.u32 %v296, 16
    %v301 = vshll.u32 %v297, 16
    %v302 = vshrl.u32 %v297, 16
    %vm303 = vc.u32 %v295, %v299
    %v304 = vsel %vm303, 1, 0
    %v305 = vadd.s32 %v295, %v299
    %v306 = vadd.s32 %v298, %v304
    %vm307 = vc.u32 %v305, %v301
    %v308 = vsel %vm307, 1, 0
    %v309 = vadd.s32 %v305, %v301
    %v310 = vadd.s32 %v306, %v308
    %v311 = vadd.s32 %v310, %v300
    %v312 = vadd.s32 %v311, %v302
    %v313 = vand.u32 %v290, 65535
    %v314 = vshrl.u32 %v290, 16
    %v315 = vand.u32 %v285, 65535
    %v316 = vshrl.u32 %v285, 16
    %v317 = vmul.u32 %v313, %v315
    %v318 = vmul.u32 %v313, %v316
    %v319 = vmul.u32 %v314, %v315
    %v320 = vmul.u32 %v314, %v316
    %v321 = vshll.u32 %v318, 16
    %v322 = vshrl.u32 %v318, 16
    %v323 = vshll.u32 %v319, 16
    %v324 = vshrl.u32 %v319, 16
    %vm325 = vc.u32 %v317, %v321
    %v326 = vsel %vm325, 1, 0
    %v327 = vadd.s32 %v317, %v321
    %v328 = vadd.s32 %v320, %v326
    %vm329 = vc.u32 %v327, %v323
    %v330 = vsel %vm329, 1, 0
    %v331 = vadd.s32 %v327, %v323
    %v332 = vadd.s32 %v328, %v330
    %v333 = vadd.s32 %v332, %v322
    %v334 = vadd.s32 %v333, %v324
    %v335 = vmul.u32 %v290, %v281
    %v336 = vadd.s32 %v312, %v331
    %vm337 = vc.u32 %v312, %v331
    %v338 = vadd.s32 %v334, 1
    %v339 = vsel %vm337, %v338, %v334
    %v340 = vadd.s32 %v335, %v339
    %v341 = vadd.s32 %v340, 536870912
    %v342 = vshrl.u32 %v341, 30
    %v343 = vshll.u32 %v342, 30
    %v344 = vsub.s32 %v340, %v343
    %vm345 = vcmp.lt.s32.totalorder %v344, 0
    %v346 = vsub.s32 0, %v344
    %v347 = vsel %vm345, %v346, %v344
    %v348 = vclz %v347
    %v349 = vsub.s32 %v348, 2
    %vm350 = vcmp.gt.s32.totalorder 0, %v349
    %v351 = vsel %vm350, 0, %v349
    %v352 = vsub.s32 32, %v351
    %v353 = vshll.u32 %v344, %v351
    %v354 = vshrl.u32 %v336, %v352
    %v355 = vor.u32 %v353, %v354
    %v356 = vsub.s32 4294967266, %v351
    %v357 = vadd.s32 %v356, 127
    %v358 = vshll.u32 %v357, 23
    %v359 = vor.u32 4788187, %v358
    %v360 = vand.u32 2147483647, %v359
    %v362 = vcvt.s32.f32 %v355
    %v363 = vmul.f32 %v362, %v360
    %v364 = vxor.u32 %v363, 2147483648
    %v365 = vsel %vm244, %v364, %v363
    %v366 = vsub.s32 4, %v342
    %v367 = vsel %vm244, %v366, %v342
    %v368 = vsel %vm243, %v86, %v365
    %v369 = vsel %vm243, 0, %v367
    %v370 = vmul.f32 %v368, %v368
    %v371 = vmul.f32 %v370, -0.001358992
    %v372 = vadd.f32 %v371, 0.041655596
    %v373 = vmul.f32 %v370, %v372
    %v374 = vadd.f32 %v373, -0.4999988
    %v375 = vmul.f32 %v370, %v374
    %v376 = vadd.f32 1.0, %v375
    %v377 = vmul.f32 %v368, %v368
    %v378 = vmul.f32 %v377, -0.00019511016
    %v379 = vadd.f32 %v378, 0.008332121
    %v380 = vmul.f32 %v377, %v379
    %v381 = vadd.f32 %v380, -0.16666654
    %v382 = vmul.f32 %v377, %v381
    %v383 = vadd.f32 %v382, 1.0
    %v384 = vmul.f32 %v383, %v368
    %vm385 = vweird.f32 %v86
    %v386 = vadd.s32 %v369, 3
    %v387 = vand.u32 %v386, 3
    %vm388 = vcmp.lt.s32.totalorder %v387, 2
    %vm389 = vcmp.eq.s32.totalorder %v387, 0
    %v390 = vxor.u32 %v384, 2147483648
    %v391 = vsel %vm389, %v376, %v390
    %vm392 = vcmp.eq.s32.totalorder %v387, 2
    %v393 = vxor.u32 %v376, 2147483648
    %v394 = vsel %vm392, %v393, %v384
    %v395 = vsel %vm388, %v391, %v394
    %v396 = vsel %vm385, nan, %v395
    %v397 = vmul.f32 %v85, %v396
    %v398 = vld [vmem:[#allocation4] sm:$0xff]
    %v399 = vmul.f32 %v241, 0.1
    %v400 = vadd.f32 %v398, %v399
    %401 = vst [vmem:[#allocation7] sm:$0xff] %v400
    %v402 = vld [vmem:[#allocation4 + $0x8] sm:$0xff]
    %v403 = vmul.f32 %v397, 0.1
    %v404 = vadd.f32 %v402, %v403
    %405 = vst [vmem:[#allocation7 + $0x8] sm:$0xff] %v404
    // Predicated region
    $region10: #{tpu_custom_call.1} parent=1 // pred_check
      _
    $region11: #{tpu_custom_call.1} parent=1 // pred_check_branch
      %407 = sbr.rel (0) target = $region13
    $region12: #{tpu_custom_call.1} parent=1 // pred_region
      %409 = vsyncadd [#allocation6], 0
      %s410 = sshll.u32 [#allocation7], 4
      %s411 = int_to_ptr.vmem [resolvable:$true] %s410
      %s412 = sshll.u32 %s2, 4
      %s413 = int_to_ptr.hbm [resolvable:$true] %s412
      %418 = dma.vmem_to_hbm [thread:$0]  %s411, 256, %s413, [#allocation6], 128, 128, 8
    $region13: #{tpu_custom_call.1} parent=1 // pred_fallthru
      _
    // Predicated region
    $region14: #{tpu_custom_call.1} parent=1 // pred_check
      _
    $region15: #{tpu_custom_call.1} parent=1 // pred_check_branch
      %420 = sbr.rel (0) target = $region17
    $region16: #{tpu_custom_call.1} parent=1 // pred_region
      %422 = dma.done [#allocation6], 256
    $region17: #{tpu_custom_call.1} parent=1 // pred_fallthru
      _
    %423 = vsyncpa [#allocation5], 1
    %424 = vsyncpa [#allocation6], 1

</llo_original>
